<compile_context>
chip_gen: v5e
topology: v5e:2x2
jax: 0.10.0
libtpu: 0.0.40
codegen_flags: <defaults>
</compile_context>

<pallas_src>
import jax
import jax.numpy as jnp
from jax.experimental import pallas as pl
from jax.experimental.pallas import tpu as pltpu


_LANE = 128
_SMALL_N_THRESHOLD = 4096        # below this, XLA fusion beats kernel overhead
_TARGET_X_BLOCK_BYTES = 2 << 20  # ~2 MiB of x per grid step (HBM roofline)
_MIN_GRID_STEPS = 8              # keep pipelining + v7x 2-TC sharding alive


# ----------------------------- Pallas kernels ------------------------------

def _value_rows(x_ref, w1_ref, b1_ref, w2t_ref, b2_ref):
    """Value network on a [tm, H] row tile -> lane-dense [1, tm] row (f32)."""
    # Hidden layer on the MXU; f32 accumulate even when x/w1 are bf16.
    h = jnp.dot(x_ref[...], w1_ref[...], preferred_element_type=jnp.float32)
    h = jnp.maximum(h + b1_ref[...], 0.0)
    # Output projection: VPU multiply + XLU lane reduction against w2^T
    # ([1, H]).  An H x 1 MXU matmul would drain a 1-lane MRF result for
    # almost no work while the first matmul already owns the MXU.
    v = jnp.sum(h * w2t_ref[...], axis=-1)          # [tm]
    return v[None, :] + b2_ref[0]                   # b2 is an SMEM scalar


def value_mlp_kernel(x_ref, w1_ref, b1_ref, w2t_ref, b2_ref, bv_ref):
    bv_ref[...] = _value_rows(x_ref, w1_ref, b1_ref, w2t_ref, b2_ref)


def fused_value_loss_kernel(x_ref, dr_ref, w1_ref, b1_ref, w2t_ref, b2_ref,
                            out_ref):
    # forward + get_loss fused: baseline values never leave VMEM before the
    # loss multiply.  out row 0 = baseline values, row 1 = loss; one (2, tm)
    # output block -> a single output DMA per grid step.
    row = _value_rows(x_ref, w1_ref, b1_ref, w2t_ref, b2_ref)
    out_ref[...] = jnp.concatenate([row, dr_ref[...] * row], axis=0)


# ------------------------------ tiling policy -------------------------------

def _round_up(v, m):
    return (v + m - 1) // m * m


def _row_tile(n, h, x_itemsize):
    """Row tile sized by bytes (~2 MiB of x per step), a multiple of 128 rows,
    capped so the grid keeps >= _MIN_GRID_STEPS steps (pipelining + megacore)."""
    tm = max(_LANE, (_TARGET_X_BLOCK_BYTES // (h * x_itemsize)) // _LANE * _LANE)
    tm_cap = max(_LANE, _round_up(pl.cdiv(n, _MIN_GRID_STEPS), _LANE))
    return min(tm, tm_cap)


def _vmem_limit_bytes(tm, h, x_itemsize, w_itemsize, n_out_rows):
    """Explicit scoped-VMEM budget: double-buffered x/dr/output tiles plus the
    pinned-but-still-double-buffered w1 block, with slack for internal
    scratch.  Keeps one tiling policy portable across v5e/v6e/v7x."""
    x_b = 2 * tm * h * x_itemsize            # x stream, 2 pipeline buffers
    dr_b = 2 * tm * 4                        # rewards row (fused path)
    w1_b = 2 * h * h * w_itemsize            # pinned (0,0) block, 2 buffers
    vec_b = 2 * 2 * h * 4                    # b1, w2^T
    out_b = 2 * n_out_rows * tm * 4          # lane-dense output rows
    total = x_b + dr_b + w1_b + vec_b + out_b + (4 << 20)
    # TODO(synk): for very large H (w1 approaching v7x's 64 MiB VMEM), add a
    # K-reduction grid axis over w1 instead of keeping it fully resident.
    return int(min(max(total, 16 << 20), 56 << 20))


def _prep_params(w1, b1, w2, b2, h, compute_dtype):
    w1c = w1.astype(compute_dtype)                 # streamed through the MXU
    b1r = b1.reshape(1, h).astype(jnp.float32)
    w2t = w2.reshape(1, h).astype(jnp.float32)     # [H, 1] -> [1, H] VPU path
    b2s = b2.reshape(1).astype(jnp.float32)        # scalar bias in SMEM
    return w1c, b1r, w2t, b2s


def _value_baseline_ref(x, w1, b1, w2, b2):
    """Plain-JAX forward (also the small-N dispatch path)."""
    h = jnp.maximum(x @ w1 + b1.reshape(1, -1), 0.0)
    return (h @ w2.reshape(-1, 1) + b2.reshape(1, 1)).reshape(-1)


# ------------------------------- wrappers ----------------------------------

def single_agent_value_baseline_forward_and_loss(states_stacked,
                                                 discounted_rewards,
                                                 w1, b1, w2, b2,
                                                 *,
                                                 compute_dtype=jnp.float32,
                                                 force_pallas=False):
    """Fused forward + get_loss.

    states_stacked:     [T, B, H]  (== torch.stack(states))
    discounted_rewards: [T*B]
    Returns (baseline_values [T*B], loss [T*B]) in f32.
    """
    T, B, H = states_stacked.shape
    N = T * B
    x = states_stacked.reshape(N, H)                # glue reshape in plain JAX
    dr = discounted_rewards.reshape(-1).astype(jnp.float32)

    if N < _SMALL_N_THRESHOLD and not force_pallas:
        # Tiny problems are pure launch/DMA overhead for a kernel.
        bv = _value_baseline_ref(x, w1, b1, w2, b2)
        return bv, dr * bv

    x = x.astype(compute_dtype)
    w1c, b1r, w2t, b2s = _prep_params(w1, b1, w2, b2, H, compute_dtype)

    x_itemsize = jnp.dtype(compute_dtype).itemsize
    tm = _row_tile(N, H, x_itemsize)
    n_pad = _round_up(N, tm)
    if n_pad != N:                                   # pad ragged N, slice later
        x = jnp.pad(x, ((0, n_pad - N), (0, 0)))
        dr = jnp.pad(dr, (0, n_pad - N))
    dr = dr.reshape(1, n_pad)                        # lane-dense row
    grid = (n_pad // tm,)

    out = pl.pallas_call(
        fused_value_loss_kernel,
        out_shape=jax.ShapeDtypeStruct((2, n_pad), jnp.float32),
        grid=grid,
        in_specs=[
            pl.BlockSpec((tm, H), lambda i: (i, 0)),            # x row tile
            pl.BlockSpec((1, tm), lambda i: (0, i)),            # rewards row
            pl.BlockSpec((H, H), lambda i: (0, 0)),             # w1 (resident)
            pl.BlockSpec((1, H), lambda i: (0, 0)),             # b1
            pl.BlockSpec((1, H), lambda i: (0, 0)),             # w2^T
            pl.BlockSpec(memory_space=pltpu.MemorySpace.SMEM),  # b2 scalar
        ],
        out_specs=pl.BlockSpec((2, tm), lambda i: (0, i)),      # [bv; loss]
        compiler_params=pltpu.CompilerParams(
            dimension_semantics=("parallel",),
            vmem_limit_bytes=_vmem_limit_bytes(tm, H, x_itemsize,
                                               x_itemsize, 2),
        ),
    )(x, dr, w1c, b1r, w2t, b2s)

    return out[0, :N], out[1, :N]


def single_agent_value_baseline_forward(states_stacked, w1, b1, w2, b2,
                                        *,
                                        compute_dtype=jnp.float32,
                                        force_pallas=False):
    """forward() only: states_stacked [T, B, H] -> baseline values [T*B]."""
    T, B, H = states_stacked.shape
    N = T * B
    x = states_stacked.reshape(N, H)

    if N < _SMALL_N_THRESHOLD and not force_pallas:
        return _value_baseline_ref(x, w1, b1, w2, b2)

    x = x.astype(compute_dtype)
    w1c, b1r, w2t, b2s = _prep_params(w1, b1, w2, b2, H, compute_dtype)

    x_itemsize = jnp.dtype(compute_dtype).itemsize
    tm = _row_tile(N, H, x_itemsize)
    n_pad = _round_up(N, tm)
    if n_pad != N:
        x = jnp.pad(x, ((0, n_pad - N), (0, 0)))
    grid = (n_pad // tm,)

    bv_row = pl.pallas_call(
        value_mlp_kernel,
        out_shape=jax.ShapeDtypeStruct((1, n_pad), jnp.float32),
        grid=grid,
        in_specs=[
            pl.BlockSpec((tm, H), lambda i: (i, 0)),
            pl.BlockSpec((H, H), lambda i: (0, 0)),
            pl.BlockSpec((1, H), lambda i: (0, 0)),
            pl.BlockSpec((1, H), lambda i: (0, 0)),
            pl.BlockSpec(memory_space=pltpu.MemorySpace.SMEM),
        ],
        out_specs=pl.BlockSpec((1, tm), lambda i: (0, i)),
        compiler_params=pltpu.CompilerParams(
            dimension_semantics=("parallel",),
            vmem_limit_bytes=_vmem_limit_bytes(tm, H, x_itemsize,
                                               x_itemsize, 1),
        ),
    )(x, w1c, b1r, w2t, b2s)

    return bv_row[0, :N]


def single_agent_value_baseline_get_loss(baseline_values, discounted_rewards):
    # A standalone elementwise multiply never pays for a pallas_call (launch
    # overhead + an extra HBM round trip); the fused kernel is the fast path.
    return discounted_rewards * baseline_values


# --------------------------------- main -------------------------------------

if __name__ == "__main__":
    # ---- case 1: module-sized tiny example (seq=8, batch=2, hidden=32) ----
    T, B, H = 8, 2, 32
    key = jax.random.PRNGKey(0)
    k_states, k_w1, k_b1, k_w2, k_b2, k_rew = jax.random.split(key, 6)

    # list of T state tensors, each [B, H]  (then "torch.stack(states)")
    states = [jax.random.normal(jax.random.fold_in(k_states, t), (B, H),
                                dtype=jnp.float32) for t in range(T)]
    states_stacked = jnp.stack(states)                      # [T, B, H]

    w1 = jax.random.normal(k_w1, (H, H), dtype=jnp.float32) * 0.1
    b1 = jax.random.normal(k_b1, (1, H), dtype=jnp.float32) * 0.1
    w2 = jax.random.normal(k_w2, (H, 1), dtype=jnp.float32) * 0.1
    b2 = jax.random.normal(k_b2, (1, 1), dtype=jnp.float32) * 0.1
    discounted_rewards = jax.random.normal(k_rew, (T * B,), dtype=jnp.float32)

    ref_bv = _value_baseline_ref(states_stacked.reshape(T * B, H),
                                 w1, b1, w2, b2)
    ref_loss = discounted_rewards * ref_bv

    # Force the Pallas path at this tiny size so the kernel itself is tested.
    bv, loss = single_agent_value_baseline_forward_and_loss(
        states_stacked, discounted_rewards, w1, b1, w2, b2, force_pallas=True)
    bv, loss = jax.block_until_ready((bv, loss))
    assert bv.shape == (T * B,) and loss.shape == (T * B,)
    assert jnp.allclose(bv, ref_bv, atol=1e-5, rtol=1e-5)
    assert jnp.allclose(loss, ref_loss, atol=1e-5, rtol=1e-5)

    # forward-only Pallas path (matches the module's forward()).
    bv_only = single_agent_value_baseline_forward(states_stacked, w1, b1, w2,
                                                  b2, force_pallas=True)
    bv_only = jax.block_until_ready(bv_only)
    assert jnp.allclose(bv_only, ref_bv, atol=1e-5, rtol=1e-5)
    loss2 = single_agent_value_baseline_get_loss(bv_only, discounted_rewards)
    assert jnp.allclose(jax.block_until_ready(loss2), ref_loss,
                        atol=1e-5, rtol=1e-5)

    # default dispatch at this size takes the plain-JAX path; check it too.
    bv_d, loss_d = single_agent_value_baseline_forward_and_loss(
        states_stacked, discounted_rewards, w1, b1, w2, b2)
    bv_d, loss_d = jax.block_until_ready((bv_d, loss_d))
    assert jnp.allclose(bv_d, ref_bv, atol=1e-6, rtol=1e-6)
    assert jnp.allclose(loss_d, ref_loss, atol=1e-6, rtol=1e-6)

    # ---- case 2: ragged N (not a multiple of 128) + multi-step grid ----
    T2, B2, H2 = 40, 13, 64                       # N = 520 -> padded to 640
    k2 = jax.random.PRNGKey(1)
    ks2, kw1, kb1, kw2, kb2, kr2 = jax.random.split(k2, 6)
    states2 = jax.random.normal(ks2, (T2, B2, H2), dtype=jnp.float32)
    w1_2 = jax.random.normal(kw1, (H2, H2), dtype=jnp.float32) * 0.1
    b1_2 = jax.random.normal(kb1, (1, H2), dtype=jnp.float32) * 0.1
    w2_2 = jax.random.normal(kw2, (H2, 1), dtype=jnp.float32) * 0.1
    b2_2 = jax.random.normal(kb2, (1, 1), dtype=jnp.float32) * 0.1
    dr_2 = jax.random.normal(kr2, (T2 * B2,), dtype=jnp.float32)

    ref_bv2 = _value_baseline_ref(states2.reshape(T2 * B2, H2),
                                  w1_2, b1_2, w2_2, b2_2)
    ref_loss2 = dr_2 * ref_bv2

    bv2, loss_2 = single_agent_value_baseline_forward_and_loss(
        states2, dr_2, w1_2, b1_2, w2_2, b2_2, force_pallas=True)
    bv2, loss_2 = jax.block_until_ready((bv2, loss_2))
    assert bv2.shape == (T2 * B2,)
    assert jnp.allclose(bv2, ref_bv2, atol=1e-5, rtol=1e-5)
    assert jnp.allclose(loss_2, ref_loss2, atol=1e-5, rtol=1e-5)

    # bf16 compute path for the dominant x / w1 stream (looser tolerance).
    bv2_bf, loss2_bf = single_agent_value_baseline_forward_and_loss(
        states2, dr_2, w1_2, b1_2, w2_2, b2_2,
        compute_dtype=jnp.bfloat16, force_pallas=True)
    bv2_bf, loss2_bf = jax.block_until_ready((bv2_bf, loss2_bf))
    assert jnp.allclose(bv2_bf, ref_bv2, atol=5e-2, rtol=5e-2)
    assert jnp.allclose(loss2_bf, ref_loss2, atol=5e-2, rtol=5e-2)

    print("KERNEL_OK")
</pallas_src>

<mosaic_0001>
module attributes {stable_mosaic.version = 11 : i64} {
  func.func @fused_value_loss_kernel(%arg0: i32, %arg1: memref<128x32xf32, #tpu.memory_space<vmem>>, %arg2: memref<1x128xf32, #tpu.memory_space<vmem>>, %arg3: memref<32x32xf32, #tpu.memory_space<vmem>>, %arg4: memref<1x32xf32, #tpu.memory_space<vmem>>, %arg5: memref<1x32xf32, #tpu.memory_space<vmem>>, %arg6: memref<1xf32, #tpu.memory_space<smem>>, %arg7: memref<2x128xf32, #tpu.memory_space<vmem>>) attributes {dimension_semantics = [#tpu.dimension_semantics<parallel>], iteration_bounds = array<i64: 1>, scalar_prefetch = 0 : i64, scratch_operands = 0 : i64, tpu.core_type = #tpu.core_type<tc>, window_params = [{transform_indices = @transform_0, window_bounds = array<i64: 128, 32>}, {transform_indices = @transform_1, window_bounds = array<i64: 1, 128>}, {pipeline_mode = #tpu.pipeline_mode<synchronous>, transform_indices = @transform_2, window_bounds = array<i64: 32, 32>}, {pipeline_mode = #tpu.pipeline_mode<synchronous>, transform_indices = @transform_3, window_bounds = array<i64: 1, 32>}, {pipeline_mode = #tpu.pipeline_mode<synchronous>, transform_indices = @transform_4, window_bounds = array<i64: 1, 32>}, {transform_indices = @transform_5, window_bounds = array<i64: 1>}, {transform_indices = @transform_6, window_bounds = array<i64: 2, 128>}]} {
    %c0 = arith.constant 0 : index
    %c0_0 = arith.constant 0 : index
    %0 = vector.load %arg1[%c0, %c0_0] : memref<128x32xf32, #tpu.memory_space<vmem>>, vector<128x32xf32>
    %c0_1 = arith.constant 0 : index
    %c0_2 = arith.constant 0 : index
    %1 = vector.load %arg3[%c0_1, %c0_2] : memref<32x32xf32, #tpu.memory_space<vmem>>, vector<32x32xf32>
    %cst = arith.constant dense<0.000000e+00> : vector<128x32xf32>
    %2 = tpu.matmul %0, %1, %cst {dimension_numbers = #tpu.dot_dimension_numbers<[1], [0], [0], [1], [0, 0, 1, 1], [], []>} : vector<128x32xf32>, vector<32x32xf32>, vector<128x32xf32> -> vector<128x32xf32>
    %c0_3 = arith.constant 0 : index
    %c0_4 = arith.constant 0 : index
    %3 = vector.load %arg4[%c0_3, %c0_4] : memref<1x32xf32, #tpu.memory_space<vmem>>, vector<1x32xf32>
    %4 = vector.broadcast %3 : vector<1x32xf32> to vector<128x32xf32>
    %5 = arith.addf %2, %4 : vector<128x32xf32>
    %cst_5 = arith.constant 0.000000e+00 : f32
    %6 = vector.broadcast %cst_5 : f32 to vector<128x32xf32>
    %7 = arith.maximumf %5, %6 : vector<128x32xf32>
    %c0_6 = arith.constant 0 : index
    %c0_7 = arith.constant 0 : index
    %8 = vector.load %arg5[%c0_6, %c0_7] : memref<1x32xf32, #tpu.memory_space<vmem>>, vector<1x32xf32>
    %9 = vector.broadcast %8 : vector<1x32xf32> to vector<128x32xf32>
    %10 = arith.mulf %7, %9 : vector<128x32xf32>
    %cst_8 = arith.constant dense<0.000000e+00> : vector<128xf32>
    %11 = vector.multi_reduction <add>, %10, %cst_8 [1] : vector<128x32xf32> to vector<128xf32>
    %12 = vector.shape_cast %11 : vector<128xf32> to vector<1x128xf32>
    %c0_9 = arith.constant 0 : index
    %13 = memref.load %arg6[%c0_9] : memref<1xf32, #tpu.memory_space<smem>>
    %14 = vector.broadcast %13 : f32 to vector<1x128xf32>
    %15 = arith.addf %12, %14 : vector<1x128xf32>
    %c0_10 = arith.constant 0 : index
    %c0_11 = arith.constant 0 : index
    %16 = vector.load %arg2[%c0_10, %c0_11] : memref<1x128xf32, #tpu.memory_space<vmem>>, vector<1x128xf32>
    %17 = arith.mulf %16, %15 : vector<1x128xf32>
    %18 = tpu.concatenate %15, %17 in 0 : vector<1x128xf32>, vector<1x128xf32> -> vector<2x128xf32>
    %c0_12 = arith.constant 0 : index
    %c0_13 = arith.constant 0 : index
    %19 = vector.load %arg7[%c0_12, %c0_13] : memref<2x128xf32, #tpu.memory_space<vmem>>, vector<2x128xf32>
    tpu.vector_store %arg7[%c0_12, %c0_13], %18 {strides = array<i32>} : memref<2x128xf32, #tpu.memory_space<vmem>>, vector<2x128xf32>,
    return
  }
  func.func @transform_0(%arg0: i32) -> (i32, i32) {
    %c0_i32 = arith.constant 0 : i32
    %c0_i32_0 = arith.constant 0 : i32
    return %arg0, %c0_i32 : i32, i32
  }
  func.func @transform_1(%arg0: i32) -> (i32, i32) {
    %c0_i32 = arith.constant 0 : i32
    %c0_i32_0 = arith.constant 0 : i32
    return %c0_i32, %arg0 : i32, i32
  }
  func.func @transform_2(%arg0: i32) -> (i32, i32) {
    %c0_i32 = arith.constant 0 : i32
    %c0_i32_0 = arith.constant 0 : i32
    %c0_i32_1 = arith.constant 0 : i32
    return %c0_i32, %c0_i32_0 : i32, i32
  }
  func.func @transform_3(%arg0: i32) -> (i32, i32) {
    %c0_i32 = arith.constant 0 : i32
    %c0_i32_0 = arith.constant 0 : i32
    %c0_i32_1 = arith.constant 0 : i32
    return %c0_i32, %c0_i32_0 : i32, i32
  }
  func.func @transform_4(%arg0: i32) -> (i32, i32) {
    %c0_i32 = arith.constant 0 : i32
    %c0_i32_0 = arith.constant 0 : i32
    %c0_i32_1 = arith.constant 0 : i32
    return %c0_i32, %c0_i32_0 : i32, i32
  }
  func.func @transform_5(%arg0: i32) -> i32 {
    %c0_i32 = arith.constant 0 : i32
    %c0_i32_0 = arith.constant 0 : i32
    return %c0_i32 : i32
  }
  func.func @transform_6(%arg0: i32) -> (i32, i32) {
    %c0_i32 = arith.constant 0 : i32
    %c0_i32_0 = arith.constant 0 : i32
    return %c0_i32, %arg0 : i32, i32
  }
}

</mosaic_0001>

<llo_original>
// kernel: tpu_custom_call.1
$region0: #{tpu_custom_call.1}
  #allocation0 [shape = 'u32[]', space=smem, size = 0x4, offset = 0x4, fixed_abs, tag = 'smem constant byte address 0x4 - core index']
  #allocation1 [shape = 'u32[72,128]{1,0:T(1,128)}', space=vmem, size = 0x9000, scoped, tag = 'internal scratch']
  #allocation2 [shape = 'f32[1]{0:T(128)S(6)}', space=smem, size = 0x200, scoped, tag = 'scoped memory for tpu_custom_call.1']
  %s0 = inlined_call_operand.vmem [shape: f32[128,32], index: 0, kind: input, shape index: {}]
  %s1 = inlined_call_operand.vmem [shape: f32[1,128], index: 1, kind: input, shape index: {}]
  %s2 = inlined_call_operand.vmem [shape: f32[32,32], index: 2, kind: input, shape index: {}]
  %s3 = inlined_call_operand.vmem [shape: f32[1,32], index: 3, kind: input, shape index: {}]
  %s4 = inlined_call_operand.vmem [shape: f32[1,32], index: 4, kind: input, shape index: {}]
  %s5 = inlined_call_operand.<no memory space> [shape: f32[1], index: 5, kind: input, shape index: {}]
  %s6 = inlined_call_operand.hbm [shape: f32[2,128], index: 6, kind: output, shape index: {}]
  %s7 = sld [smem:[#allocation0]]
  $region34: #{tpu_custom_call.1} parent=0
    _
  %s9 = ssub.s32 1, %s7
  %s10 = scalar_select 0, %s9, %s7
  %11 = sst [smem:[#allocation2]] %s5
  $region1: #{tpu_custom_call.1} parent=0
    #allocation3 [shape = 'u8[1024]{0}', space=vmem, size = 0x400, scoped, tag = 'output window, operand 0, single buffered']
    #allocation4 [shape = 's32[1]{0}', space=sflag, size = 0x4, scoped, tag = 'scoped memory for tpu_custom_call.1']
    %12 = vsyncpa [#allocation4], 0
    // Predicated region
    $region2: #{tpu_custom_call.1} parent=1 // pred_check
      _
    $region3: #{tpu_custom_call.1} parent=1 // pred_check_branch
      %14 = sbr.rel (0) target = $region5
    $region4: #{tpu_custom_call.1} parent=1 // pred_region
      _
    $region5: #{tpu_custom_call.1} parent=1 // pred_fallthru
      _
    // Predicated region
    $region6: #{tpu_custom_call.1} parent=1 // pred_check
      _
    $region7: #{tpu_custom_call.1} parent=1 // pred_check_branch
      %16 = sbr.rel (0) target = $region9
    $region8: #{tpu_custom_call.1} parent=1 // pred_region
      _
    $region9: #{tpu_custom_call.1} parent=1 // pred_fallthru
      _
    // Predicated region
    $region10: #{tpu_custom_call.1} parent=1 // pred_check
      _
    $region11: #{tpu_custom_call.1} parent=1 // pred_check_branch
      %18 = sbr.rel (0) target = $region13
    $region12: #{tpu_custom_call.1} parent=1 // pred_region
      _
    $region13: #{tpu_custom_call.1} parent=1 // pred_fallthru
      _
    // Predicated region
    $region14: #{tpu_custom_call.1} parent=1 // pred_check
      _
    $region15: #{tpu_custom_call.1} parent=1 // pred_check_branch
      %20 = sbr.rel (0) target = $region17
    $region16: #{tpu_custom_call.1} parent=1 // pred_region
      _
    $region17: #{tpu_custom_call.1} parent=1 // pred_fallthru
      _
    // Predicated region
    $region18: #{tpu_custom_call.1} parent=1 // pred_check
      _
    $region19: #{tpu_custom_call.1} parent=1 // pred_check_branch
      %22 = sbr.rel (0) target = $region21
    $region20: #{tpu_custom_call.1} parent=1 // pred_region
      _
    $region21: #{tpu_custom_call.1} parent=1 // pred_fallthru
      _
    // Predicated region
    $region22: #{tpu_custom_call.1} parent=1 // pred_check
      _
    $region23: #{tpu_custom_call.1} parent=1 // pred_check_branch
      %24 = sbr.rel (0) target = $region25
    $region24: #{tpu_custom_call.1} parent=1 // pred_region
      _
    $region25: #{tpu_custom_call.1} parent=1 // pred_fallthru
      _
    %v25 = vld [vmem:[%s0] sm:$0xff]
    %v26 = vld [vmem:[%s0 + $0x8] sm:$0xff]
    %v27 = vld [vmem:[%s0 + $0x10] sm:$0xff]
    %v28 = vld [vmem:[%s0 + $0x18] sm:$0xff]
    %v29 = vld [vmem:[%s0 + $0x20] sm:$0xff]
    %v30 = vld [vmem:[%s0 + $0x28] sm:$0xff]
    %v31 = vld [vmem:[%s0 + $0x30] sm:$0xff]
    %v32 = vld [vmem:[%s0 + $0x38] sm:$0xff]
    %v33 = vld [vmem:[%s0 + $0x40] sm:$0xff]
    %v34 = vld [vmem:[%s0 + $0x48] sm:$0xff]
    %v35 = vld [vmem:[%s0 + $0x50] sm:$0xff]
    %v36 = vld [vmem:[%s0 + $0x58] sm:$0xff]
    %v37 = vld [vmem:[%s0 + $0x60] sm:$0xff]
    %v38 = vld [vmem:[%s0 + $0x68] sm:$0xff]
    %v39 = vld [vmem:[%s0 + $0x70] sm:$0xff]
    %v40 = vld [vmem:[%s0 + $0x78] sm:$0xff]
    %v41 = vld [vmem:[%s2] sm:$0xff]
    %v42 = vld [vmem:[%s2 + $0x8] sm:$0xff]
    %v43 = vld [vmem:[%s2 + $0x10] sm:$0xff]
    %v44 = vld [vmem:[%s2 + $0x18] sm:$0xff]
    %v45 = vld [vmem:[%s3] sm:$0x1]
    %v47 = vperm.slane %v45, 0
    %vm49 = vcmask 261120
    %v51 = vsel %vm49, %v25, 0
    %v54 = vsel %vm49, %v26, 0
    %v57 = vsel %vm49, %v27, 0
    %v60 = vsel %vm49, %v28, 0
    %v63 = vsel %vm49, %v29, 0
    %v66 = vsel %vm49, %v30, 0
    %v69 = vsel %vm49, %v31, 0
    %v72 = vsel %vm49, %v32, 0
    %v75 = vsel %vm49, %v33, 0
    %v78 = vsel %vm49, %v34, 0
    %v81 = vsel %vm49, %v35, 0
    %v84 = vsel %vm49, %v36, 0
    %v87 = vsel %vm49, %v37, 0
    %v90 = vsel %vm49, %v38, 0
    %v93 = vsel %vm49, %v39, 0
    %v96 = vsel %vm49, %v40, 0
    %98 = vmatpush.msra.mxu0 0.0
    %99 = vmatpush.msra.mxu0 0.0
    %100 = vmatpush.msra.mxu0 0.0
    %101 = vmatpush.msra.mxu0 0.0
    %102 = vmatpush.msra.mxu0 0.0
    %103 = vmatpush.msra.mxu0 0.0
    %104 = vmatpush.msra.mxu0 0.0
    %105 = vmatpush.msra.mxu0 0.0
    %106 = vmatpush.msra.mxu0 0.0
    %107 = vmatpush.msra.mxu0 0.0
    %108 = vmatpush.msra.mxu0 0.0
    %109 = vmatpush.msra.mxu0 0.0
    %110 = vmatpush.msra.mxu0 %v44
    %111 = vmatpush.msra.mxu0 %v43
    %112 = vmatpush.msra.mxu0 %v42
    %113 = vmatpush.msra.mxu0 %v41
    %114 = vmatmul.f32.gmra.mxu0 %v51
    %v115 = vpop.f32.mrf.mxu0
    %v116 = vadd.f32 %v47, %v115
    %117 = vmatmul.f32.gmra.mxu0 %v54
    %v118 = vpop.f32.mrf.mxu0
    %v119 = vadd.f32 %v47, %v118
    %120 = vmatmul.f32.gmra.mxu0 %v57
    %v121 = vpop.f32.mrf.mxu0
    %v122 = vadd.f32 %v47, %v121
    %123 = vmatmul.f32.gmra.mxu0 %v60
    %v124 = vpop.f32.mrf.mxu0
    %v125 = vadd.f32 %v47, %v124
    %126 = vmatmul.f32.gmra.mxu0 %v63
    %v127 = vpop.f32.mrf.mxu0
    %v128 = vadd.f32 %v47, %v127
    %129 = vmatmul.f32.gmra.mxu0 %v66
    %v130 = vpop.f32.mrf.mxu0
    %v131 = vadd.f32 %v47, %v130
    %132 = vmatmul.f32.gmra.mxu0 %v69
    %v133 = vpop.f32.mrf.mxu0
    %v134 = vadd.f32 %v47, %v133
    %135 = vmatmul.f32.gmra.mxu0 %v72
    %v136 = vpop.f32.mrf.mxu0
    %v137 = vadd.f32 %v47, %v136
    %138 = vmatmul.f32.gmra.mxu0 %v75
    %v139 = vpop.f32.mrf.mxu0
    %v140 = vadd.f32 %v47, %v139
    %141 = vmatmul.f32.gmra.mxu0 %v78
    %v142 = vpop.f32.mrf.mxu0
    %v143 = vadd.f32 %v47, %v142
    %144 = vmatmul.f32.gmra.mxu0 %v81
    %v145 = vpop.f32.mrf.mxu0
    %v146 = vadd.f32 %v47, %v145
    %147 = vmatmul.f32.gmra.mxu0 %v84
    %v148 = vpop.f32.mrf.mxu0
    %v149 = vadd.f32 %v47, %v148
    %150 = vmatmul.f32.gmra.mxu0 %v87
    %v151 = vpop.f32.mrf.mxu0
    %v152 = vadd.f32 %v47, %v151
    %153 = vmatmul.f32.gmra.mxu0 %v90
    %v154 = vpop.f32.mrf.mxu0
    %v155 = vadd.f32 %v47, %v154
    %156 = vmatmul.f32.gmra.mxu0 %v93
    %v157 = vpop.f32.mrf.mxu0
    %v158 = vadd.f32 %v47, %v157
    %159 = vmatmul.f32.gmra.mxu0 %v96
    %v160 = vpop.f32.mrf.mxu0
    %v161 = vadd.f32 %v47, %v160
    %162 = vdwg.mxu0
    %v163 = vmax.f32 %v116, 0.0
    %v164 = vmax.f32 %v119, 0.0
    %v165 = vmax.f32 %v122, 0.0
    %v166 = vmax.f32 %v125, 0.0
    %v167 = vmax.f32 %v128, 0.0
    %v168 = vmax.f32 %v131, 0.0
    %v169 = vmax.f32 %v134, 0.0
    %v170 = vmax.f32 %v137, 0.0
    %v171 = vmax.f32 %v140, 0.0
    %v172 = vmax.f32 %v143, 0.0
    %v173 = vmax.f32 %v146, 0.0
    %v174 = vmax.f32 %v149, 0.0
    %v175 = vmax.f32 %v152, 0.0
    %v176 = vmax.f32 %v155, 0.0
    %v177 = vmax.f32 %v158, 0.0
    %v178 = vmax.f32 %v161, 0.0
    %v179 = vld [vmem:[%s4] sm:$0x1]
    %v181 = vperm.slane %v179, 0
    %v183 = vmul.f32 %v163, %v181
    %v184 = vmul.f32 %v164, %v181
    %v185 = vmul.f32 %v165, %v181
    %v186 = vmul.f32 %v166, %v181
    %v187 = vmul.f32 %v167, %v181
    %v188 = vmul.f32 %v168, %v181
    %v189 = vmul.f32 %v169, %v181
    %v190 = vmul.f32 %v170, %v181
    %v191 = vmul.f32 %v171, %v181
    %v192 = vmul.f32 %v172, %v181
    %v193 = vmul.f32 %v173, %v181
    %v194 = vmul.f32 %v174, %v181
    %v195 = vmul.f32 %v175, %v181
    %v196 = vmul.f32 %v176, %v181
    %v197 = vmul.f32 %v177, %v181
    %v198 = vmul.f32 %v178, %v181
    %v199 = vsel %vm49, %v183, 0.0
    %200 = vadd.xlane.f32.xlu0 %v199
    %v201 = vpop.xlane.xlu0 %200
    %v202 = vsel %vm49, %v184, 0.0
    %203 = vadd.xlane.f32.xlu0 %v202
    %v204 = vpop.xlane.xlu0 %203
    %v205 = vsel %vm49, %v185, 0.0
    %206 = vadd.xlane.f32.xlu0 %v205
    %v207 = vpop.xlane.xlu0 %206
    %v208 = vsel %vm49, %v186, 0.0
    %209 = vadd.xlane.f32.xlu0 %v208
    %v210 = vpop.xlane.xlu0 %209
    %v211 = vsel %vm49, %v187, 0.0
    %212 = vadd.xlane.f32.xlu0 %v211
    %v213 = vpop.xlane.xlu0 %212
    %v214 = vsel %vm49, %v188, 0.0
    %215 = vadd.xlane.f32.xlu0 %v214
    %v216 = vpop.xlane.xlu0 %215
    %v217 = vsel %vm49, %v189, 0.0
    %218 = vadd.xlane.f32.xlu0 %v217
    %v219 = vpop.xlane.xlu0 %218
    %v220 = vsel %vm49, %v190, 0.0
    %221 = vadd.xlane.f32.xlu0 %v220
    %v222 = vpop.xlane.xlu0 %221
    %v223 = vsel %vm49, %v191, 0.0
    %224 = vadd.xlane.f32.xlu0 %v223
    %v225 = vpop.xlane.xlu0 %224
    %v226 = vsel %vm49, %v192, 0.0
    %227 = vadd.xlane.f32.xlu0 %v226
    %v228 = vpop.xlane.xlu0 %227
    %v229 = vsel %vm49, %v193, 0.0
    %230 = vadd.xlane.f32.xlu0 %v229
    %v231 = vpop.xlane.xlu0 %230
    %v232 = vsel %vm49, %v194, 0.0
    %233 = vadd.xlane.f32.xlu0 %v232
    %v234 = vpop.xlane.xlu0 %233
    %v235 = vsel %vm49, %v195, 0.0
    %236 = vadd.xlane.f32.xlu0 %v235
    %v237 = vpop.xlane.xlu0 %236
    %v238 = vsel %vm49, %v196, 0.0
    %239 = vadd.xlane.f32.xlu0 %v238
    %v240 = vpop.xlane.xlu0 %239
    %v241 = vsel %vm49, %v197, 0.0
    %242 = vadd.xlane.f32.xlu0 %v241
    %v243 = vpop.xlane.xlu0 %242
    %v244 = vsel %vm49, %v198, 0.0
    %245 = vadd.xlane.f32.xlu0 %v244
    %v246 = vpop.xlane.xlu0 %245
    %s247 = sld [smem:[#allocation2]]
    %v248 = vstv %s247
    %v249 = vadd.f32 %v201, %v248
    %v250 = vadd.f32 %v204, %v248
    %v251 = vadd.f32 %v207, %v248
    %v252 = vadd.f32 %v210, %v248
    %v253 = vadd.f32 %v213, %v248
    %v254 = vadd.f32 %v216, %v248
    %v255 = vadd.f32 %v219, %v248
    %v256 = vadd.f32 %v222, %v248
    %v257 = vadd.f32 %v225, %v248
    %v258 = vadd.f32 %v228, %v248
    %v259 = vadd.f32 %v231, %v248
    %v260 = vadd.f32 %v234, %v248
    %v261 = vadd.f32 %v237, %v248
    %v262 = vadd.f32 %v240, %v248
    %v263 = vadd.f32 %v243, %v248
    %v264 = vadd.f32 %v246, %v248
    %v265 = vld [vmem:[%s1] sm:$0x1]
    %v282 = vperm.slane %v249, 0
    %v283 = vperm.slane %v249, 1
    %v284 = vperm.slane %v249, 2
    %v285 = vperm.slane %v249, 3
    %v286 = vperm.slane %v249, 4
    %v287 = vperm.slane %v249, 5
    %v288 = vperm.slane %v249, 6
    %v289 = vperm.slane %v249, 7
    %v290 = vperm.slane %v250, 0
    %v291 = vperm.slane %v250, 1
    %v292 = vperm.slane %v250, 2
    %v293 = vperm.slane %v250, 3
    %v294 = vperm.slane %v250, 4
    %v295 = vperm.slane %v250, 5
    %v296 = vperm.slane %v250, 6
    %v297 = vperm.slane %v250, 7
    %v298 = vperm.slane %v251, 0
    %v299 = vperm.slane %v251, 1
    %v300 = vperm.slane %v251, 2
    %v301 = vperm.slane %v251, 3
    %v302 = vperm.slane %v251, 4
    %v303 = vperm.slane %v251, 5
    %v304 = vperm.slane %v251, 6
    %v305 = vperm.slane %v251, 7
    %v306 = vperm.slane %v252, 0
    %v307 = vperm.slane %v252, 1
    %v308 = vperm.slane %v252, 2
    %v309 = vperm.slane %v252, 3
    %v310 = vperm.slane %v252, 4
    %v311 = vperm.slane %v252, 5
    %v312 = vperm.slane %v252, 6
    %v313 = vperm.slane %v252, 7
    %v314 = vperm.slane %v253, 0
    %v315 = vperm.slane %v253, 1
    %v316 = vperm.slane %v253, 2
    %v317 = vperm.slane %v253, 3
    %v318 = vperm.slane %v253, 4
    %v319 = vperm.slane %v253, 5
    %v320 = vperm.slane %v253, 6
    %v321 = vperm.slane %v253, 7
    %v322 = vperm.slane %v254, 0
    %v323 = vperm.slane %v254, 1
    %v324 = vperm.slane %v254, 2
    %v325 = vperm.slane %v254, 3
    %v326 = vperm.slane %v254, 4
    %v327 = vperm.slane %v254, 5
    %v328 = vperm.slane %v254, 6
    %v329 = vperm.slane %v254, 7
    %v330 = vperm.slane %v255, 0
    %v331 = vperm.slane %v255, 1
    %v332 = vperm.slane %v255, 2
    %v333 = vperm.slane %v255, 3
    %v334 = vperm.slane %v255, 4
    %v335 = vperm.slane %v255, 5
    %v336 = vperm.slane %v255, 6
    %v337 = vperm.slane %v255, 7
    %v338 = vperm.slane %v256, 0
    %v339 = vperm.slane %v256, 1
    %v340 = vperm.slane %v256, 2
    %v341 = vperm.slane %v256, 3
    %v342 = vperm.slane %v256, 4
    %v343 = vperm.slane %v256, 5
    %v344 = vperm.slane %v256, 6
    %v345 = vperm.slane %v256, 7
    %v346 = vperm.slane %v257, 0
    %v347 = vperm.slane %v257, 1
    %v348 = vperm.slane %v257, 2
    %v349 = vperm.slane %v257, 3
    %v350 = vperm.slane %v257, 4
    %v351 = vperm.slane %v257, 5
    %v352 = vperm.slane %v257, 6
    %v353 = vperm.slane %v257, 7
    %v354 = vperm.slane %v258, 0
    %v355 = vperm.slane %v258, 1
    %v356 = vperm.slane %v258, 2
    %v357 = vperm.slane %v258, 3
    %v358 = vperm.slane %v258, 4
    %v359 = vperm.slane %v258, 5
    %v360 = vperm.slane %v258, 6
    %v361 = vperm.slane %v258, 7
    %v362 = vperm.slane %v259, 0
    %v363 = vperm.slane %v259, 1
    %v364 = vperm.slane %v259, 2
    %v365 = vperm.slane %v259, 3
    %v366 = vperm.slane %v259, 4
    %v367 = vperm.slane %v259, 5
    %v368 = vperm.slane %v259, 6
    %v369 = vperm.slane %v259, 7
    %v370 = vperm.slane %v260, 0
    %v371 = vperm.slane %v260, 1
    %v372 = vperm.slane %v260, 2
    %v373 = vperm.slane %v260, 3
    %v374 = vperm.slane %v260, 4
    %v375 = vperm.slane %v260, 5
    %v376 = vperm.slane %v260, 6
    %v377 = vperm.slane %v260, 7
    %v378 = vperm.slane %v261, 0
    %v379 = vperm.slane %v261, 1
    %v380 = vperm.slane %v261, 2
    %v381 = vperm.slane %v261, 3
    %v382 = vperm.slane %v261, 4
    %v383 = vperm.slane %v261, 5
    %v384 = vperm.slane %v261, 6
    %v385 = vperm.slane %v261, 7
    %v386 = vperm.slane %v262, 0
    %v387 = vperm.slane %v262, 1
    %v388 = vperm.slane %v262, 2
    %v389 = vperm.slane %v262, 3
    %v390 = vperm.slane %v262, 4
    %v391 = vperm.slane %v262, 5
    %v392 = vperm.slane %v262, 6
    %v393 = vperm.slane %v262, 7
    %v394 = vperm.slane %v263, 0
    %v395 = vperm.slane %v263, 1
    %v396 = vperm.slane %v263, 2
    %v397 = vperm.slane %v263, 3
    %v398 = vperm.slane %v263, 4
    %v399 = vperm.slane %v263, 5
    %v400 = vperm.slane %v263, 6
    %v401 = vperm.slane %v263, 7
    %v402 = vperm.slane %v264, 0
    %v403 = vperm.slane %v264, 1
    %v404 = vperm.slane %v264, 2
    %v405 = vperm.slane %v264, 3
    %v406 = vperm.slane %v264, 4
    %v407 = vperm.slane %v264, 5
    %v408 = vperm.slane %v264, 6
    %v409 = vperm.slane %v264, 7
    %410 = vst [vmem:[#allocation1] ss:$9 sm:$0xff] %v282
    %s411 = scalar_lea.vmem [#allocation1], 1
    %412 = vst [vmem:[%s411] ss:$9 sm:$0xff] %v283
    %s413 = scalar_lea.vmem [#allocation1], 2
    %414 = vst [vmem:[%s413] ss:$9 sm:$0xff] %v284
    %s415 = scalar_lea.vmem [#allocation1], 3
    %416 = vst [vmem:[%s415] ss:$9 sm:$0xff] %v285
    %s417 = scalar_lea.vmem [#allocation1], 4
    %418 = vst [vmem:[%s417] ss:$9 sm:$0xff] %v286
    %s419 = scalar_lea.vmem [#allocation1], 5
    %420 = vst [vmem:[%s419] ss:$9 sm:$0xff] %v287
    %s421 = scalar_lea.vmem [#allocation1], 6
    %422 = vst [vmem:[%s421] ss:$9 sm:$0xff] %v288
    %s423 = scalar_lea.vmem [#allocation1], 7
    %424 = vst [vmem:[%s423] ss:$9 sm:$0xff] %v289
    %v425 = vld [vmem:[#allocation1] sm:$0xff]
    %426 = vst [vmem:[#allocation1] ss:$9 sm:$0xff] %v290
    %427 = vst [vmem:[%s411] ss:$9 sm:$0xff] %v291
    %428 = vst [vmem:[%s413] ss:$9 sm:$0xff] %v292
    %429 = vst [vmem:[%s415] ss:$9 sm:$0xff] %v293
    %430 = vst [vmem:[%s417] ss:$9 sm:$0xff] %v294
    %431 = vst [vmem:[%s419] ss:$9 sm:$0xff] %v295
    %432 = vst [vmem:[%s421] ss:$9 sm:$0xff] %v296
    %433 = vst [vmem:[%s423] ss:$9 sm:$0xff] %v297
    %v434 = vld [vmem:[#allocation1] sm:$0xff]
    %435 = vst [vmem:[#allocation1] ss:$9 sm:$0xff] %v298
    %436 = vst [vmem:[%s411] ss:$9 sm:$0xff] %v299
    %437 = vst [vmem:[%s413] ss:$9 sm:$0xff] %v300
    %438 = vst [vmem:[%s415] ss:$9 sm:$0xff] %v301
    %439 = vst [vmem:[%s417] ss:$9 sm:$0xff] %v302
    %440 = vst [vmem:[%s419] ss:$9 sm:$0xff] %v303
    %441 = vst [vmem:[%s421] ss:$9 sm:$0xff] %v304
    %442 = vst [vmem:[%s423] ss:$9 sm:$0xff] %v305
    %v443 = vld [vmem:[#allocation1] sm:$0xff]
    %444 = vst [vmem:[#allocation1] ss:$9 sm:$0xff] %v306
    %445 = vst [vmem:[%s411] ss:$9 sm:$0xff] %v307
    %446 = vst [vmem:[%s413] ss:$9 sm:$0xff] %v308
    %447 = vst [vmem:[%s415] ss:$9 sm:$0xff] %v309
    %448 = vst [vmem:[%s417] ss:$9 sm:$0xff] %v310
    %449 = vst [vmem:[%s419] ss:$9 sm:$0xff] %v311
    %450 = vst [vmem:[%s421] ss:$9 sm:$0xff] %v312
    %451 = vst [vmem:[%s423] ss:$9 sm:$0xff] %v313
    %v452 = vld [vmem:[#allocation1] sm:$0xff]
    %453 = vst [vmem:[#allocation1] ss:$9 sm:$0xff] %v314
    %454 = vst [vmem:[%s411] ss:$9 sm:$0xff] %v315
    %455 = vst [vmem:[%s413] ss:$9 sm:$0xff] %v316
    %456 = vst [vmem:[%s415] ss:$9 sm:$0xff] %v317
    %457 = vst [vmem:[%s417] ss:$9 sm:$0xff] %v318
    %458 = vst [vmem:[%s419] ss:$9 sm:$0xff] %v319
    %459 = vst [vmem:[%s421] ss:$9 sm:$0xff] %v320
    %460 = vst [vmem:[%s423] ss:$9 sm:$0xff] %v321
    %v461 = vld [vmem:[#allocation1] sm:$0xff]
    %462 = vst [vmem:[#allocation1] ss:$9 sm:$0xff] %v322
    %463 = vst [vmem:[%s411] ss:$9 sm:$0xff] %v323
    %464 = vst [vmem:[%s413] ss:$9 sm:$0xff] %v324
    %465 = vst [vmem:[%s415] ss:$9 sm:$0xff] %v325
    %466 = vst [vmem:[%s417] ss:$9 sm:$0xff] %v326
    %467 = vst [vmem:[%s419] ss:$9 sm:$0xff] %v327
    %468 = vst [vmem:[%s421] ss:$9 sm:$0xff] %v328
    %469 = vst [vmem:[%s423] ss:$9 sm:$0xff] %v329
    %v470 = vld [vmem:[#allocation1] sm:$0xff]
    %471 = vst [vmem:[#allocation1] ss:$9 sm:$0xff] %v330
    %472 = vst [vmem:[%s411] ss:$9 sm:$0xff] %v331
    %473 = vst [vmem:[%s413] ss:$9 sm:$0xff] %v332
    %474 = vst [vmem:[%s415] ss:$9 sm:$0xff] %v333
    %475 = vst [vmem:[%s417] ss:$9 sm:$0xff] %v334
    %476 = vst [vmem:[%s419] ss:$9 sm:$0xff] %v335
    %477 = vst [vmem:[%s421] ss:$9 sm:$0xff] %v336
    %478 = vst [vmem:[%s423] ss:$9 sm:$0xff] %v337
    %v479 = vld [vmem:[#allocation1] sm:$0xff]
    %480 = vst [vmem:[#allocation1] ss:$9 sm:$0xff] %v338
    %481 = vst [vmem:[%s411] ss:$9 sm:$0xff] %v339
    %482 = vst [vmem:[%s413] ss:$9 sm:$0xff] %v340
    %483 = vst [vmem:[%s415] ss:$9 sm:$0xff] %v341
    %484 = vst [vmem:[%s417] ss:$9 sm:$0xff] %v342
    %485 = vst [vmem:[%s419] ss:$9 sm:$0xff] %v343
    %486 = vst [vmem:[%s421] ss:$9 sm:$0xff] %v344
    %487 = vst [vmem:[%s423] ss:$9 sm:$0xff] %v345
    %v488 = vld [vmem:[#allocation1] sm:$0xff]
    %489 = vst [vmem:[#allocation1] ss:$9 sm:$0xff] %v346
    %490 = vst [vmem:[%s411] ss:$9 sm:$0xff] %v347
    %491 = vst [vmem:[%s413] ss:$9 sm:$0xff] %v348
    %492 = vst [vmem:[%s415] ss:$9 sm:$0xff] %v349
    %493 = vst [vmem:[%s417] ss:$9 sm:$0xff] %v350
    %494 = vst [vmem:[%s419] ss:$9 sm:$0xff] %v351
    %495 = vst [vmem:[%s421] ss:$9 sm:$0xff] %v352
    %496 = vst [vmem:[%s423] ss:$9 sm:$0xff] %v353
    %v497 = vld [vmem:[#allocation1] sm:$0xff]
    %498 = vst [vmem:[#allocation1] ss:$9 sm:$0xff] %v354
    %499 = vst [vmem:[%s411] ss:$9 sm:$0xff] %v355
    %500 = vst [vmem:[%s413] ss:$9 sm:$0xff] %v356
    %501 = vst [vmem:[%s415] ss:$9 sm:$0xff] %v357
    %502 = vst [vmem:[%s417] ss:$9 sm:$0xff] %v358
    %503 = vst [vmem:[%s419] ss:$9 sm:$0xff] %v359
    %504 = vst [vmem:[%s421] ss:$9 sm:$0xff] %v360
    %505 = vst [vmem:[%s423] ss:$9 sm:$0xff] %v361
    %v506 = vld [vmem:[#allocation1] sm:$0xff]
    %507 = vst [vmem:[#allocation1] ss:$9 sm:$0xff] %v362
    %508 = vst [vmem:[%s411] ss:$9 sm:$0xff] %v363
    %509 = vst [vmem:[%s413] ss:$9 sm:$0xff] %v364
    %510 = vst [vmem:[%s415] ss:$9 sm:$0xff] %v365
    %511 = vst [vmem:[%s417] ss:$9 sm:$0xff] %v366
    %512 = vst [vmem:[%s419] ss:$9 sm:$0xff] %v367
    %513 = vst [vmem:[%s421] ss:$9 sm:$0xff] %v368
    %514 = vst [vmem:[%s423] ss:$9 sm:$0xff] %v369
    %v515 = vld [vmem:[#allocation1] sm:$0xff]
    %516 = vst [vmem:[#allocation1] ss:$9 sm:$0xff] %v370
    %517 = vst [vmem:[%s411] ss:$9 sm:$0xff] %v371
    %518 = vst [vmem:[%s413] ss:$9 sm:$0xff] %v372
    %519 = vst [vmem:[%s415] ss:$9 sm:$0xff] %v373
    %520 = vst [vmem:[%s417] ss:$9 sm:$0xff] %v374
    %521 = vst [vmem:[%s419] ss:$9 sm:$0xff] %v375
    %522 = vst [vmem:[%s421] ss:$9 sm:$0xff] %v376
    %523 = vst [vmem:[%s423] ss:$9 sm:$0xff] %v377
    %v524 = vld [vmem:[#allocation1] sm:$0xff]
    %525 = vst [vmem:[#allocation1] ss:$9 sm:$0xff] %v378
    %526 = vst [vmem:[%s411] ss:$9 sm:$0xff] %v379
    %527 = vst [vmem:[%s413] ss:$9 sm:$0xff] %v380
    %528 = vst [vmem:[%s415] ss:$9 sm:$0xff] %v381
    %529 = vst [vmem:[%s417] ss:$9 sm:$0xff] %v382
    %530 = vst [vmem:[%s419] ss:$9 sm:$0xff] %v383
    %531 = vst [vmem:[%s421] ss:$9 sm:$0xff] %v384
    %532 = vst [vmem:[%s423] ss:$9 sm:$0xff] %v385
    %v533 = vld [vmem:[#allocation1] sm:$0xff]
    %534 = vst [vmem:[#allocation1] ss:$9 sm:$0xff] %v386
    %535 = vst [vmem:[%s411] ss:$9 sm:$0xff] %v387
    %536 = vst [vmem:[%s413] ss:$9 sm:$0xff] %v388
    %537 = vst [vmem:[%s415] ss:$9 sm:$0xff] %v389
    %538 = vst [vmem:[%s417] ss:$9 sm:$0xff] %v390
    %539 = vst [vmem:[%s419] ss:$9 sm:$0xff] %v391
    %540 = vst [vmem:[%s421] ss:$9 sm:$0xff] %v392
    %541 = vst [vmem:[%s423] ss:$9 sm:$0xff] %v393
    %v542 = vld [vmem:[#allocation1] sm:$0xff]
    %543 = vst [vmem:[#allocation1] ss:$9 sm:$0xff] %v394
    %544 = vst [vmem:[%s411] ss:$9 sm:$0xff] %v395
    %545 = vst [vmem:[%s413] ss:$9 sm:$0xff] %v396
    %546 = vst [vmem:[%s415] ss:$9 sm:$0xff] %v397
    %547 = vst [vmem:[%s417] ss:$9 sm:$0xff] %v398
    %548 = vst [vmem:[%s419] ss:$9 sm:$0xff] %v399
    %549 = vst [vmem:[%s421] ss:$9 sm:$0xff] %v400
    %550 = vst [vmem:[%s423] ss:$9 sm:$0xff] %v401
    %v551 = vld [vmem:[#allocation1] sm:$0xff]
    %552 = vst [vmem:[#allocation1] ss:$9 sm:$0xff] %v402
    %553 = vst [vmem:[%s411] ss:$9 sm:$0xff] %v403
    %554 = vst [vmem:[%s413] ss:$9 sm:$0xff] %v404
    %555 = vst [vmem:[%s415] ss:$9 sm:$0xff] %v405
    %556 = vst [vmem:[%s417] ss:$9 sm:$0xff] %v406
    %557 = vst [vmem:[%s419] ss:$9 sm:$0xff] %v407
    %558 = vst [vmem:[%s421] ss:$9 sm:$0xff] %v408
    %559 = vst [vmem:[%s423] ss:$9 sm:$0xff] %v409
    %v560 = vld [vmem:[#allocation1] sm:$0xff]
    %561 = vset.pattern.permute.xlu0 0
    %562 = vperm.xlu0 %561, %v425
    %v563 = vpop.permute.xlu0 %562
    %564 = vset.pattern.permute.xlu0 0
    %565 = vperm.xlu0 %564, %v434
    %v566 = vpop.permute.xlu0 %565
    %567 = vset.pattern.permute.xlu0 0
    %568 = vperm.xlu0 %567, %v443
    %v569 = vpop.permute.xlu0 %568
    %570 = vset.pattern.permute.xlu0 0
    %571 = vperm.xlu0 %570, %v452
    %v572 = vpop.permute.xlu0 %571
    %573 = vset.pattern.permute.xlu0 0
    %574 = vperm.xlu0 %573, %v461
    %v575 = vpop.permute.xlu0 %574
    %576 = vset.pattern.permute.xlu0 0
    %577 = vperm.xlu0 %576, %v470
    %v578 = vpop.permute.xlu0 %577
    %579 = vset.pattern.permute.xlu0 0
    %580 = vperm.xlu0 %579, %v479
    %v581 = vpop.permute.xlu0 %580
    %582 = vset.pattern.permute.xlu0 0
    %583 = vperm.xlu0 %582, %v488
    %v584 = vpop.permute.xlu0 %583
    %585 = vset.pattern.permute.xlu0 0
    %586 = vperm.xlu0 %585, %v497
    %v587 = vpop.permute.xlu0 %586
    %588 = vset.pattern.permute.xlu0 0
    %589 = vperm.xlu0 %588, %v506
    %v590 = vpop.permute.xlu0 %589
    %591 = vset.pattern.permute.xlu0 0
    %592 = vperm.xlu0 %591, %v515
    %v593 = vpop.permute.xlu0 %592
    %594 = vset.pattern.permute.xlu0 0
    %595 = vperm.xlu0 %594, %v524
    %v596 = vpop.permute.xlu0 %595
    %597 = vset.pattern.permute.xlu0 0
    %598 = vperm.xlu0 %597, %v533
    %v599 = vpop.permute.xlu0 %598
    %600 = vset.pattern.permute.xlu0 0
    %601 = vperm.xlu0 %600, %v542
    %v602 = vpop.permute.xlu0 %601
    %603 = vset.pattern.permute.xlu0 0
    %604 = vperm.xlu0 %603, %v551
    %v605 = vpop.permute.xlu0 %604
    %606 = vset.pattern.permute.xlu0 0
    %607 = vperm.xlu0 %606, %v560
    %v608 = vpop.permute.xlu0 %607
    %v609 = vlaneseq
    %v610 = vand.u32 %v609, 127
    %v611 = vperm.slane %v563, %v610
    %v612 = vadd.s32 %v610, 4294967288
    %v613 = vperm.slane %v566, %v612
    %vm614 = vcmask 130112
    %v615 = vsel %vm614, %v613, %v611
    %v616 = vadd.s32 %v610, 4294967280
    %v617 = vperm.slane %v569, %v616
    %vm618 = vcmask 195712
    %v619 = vsel %vm618, %v617, %v615
    %v620 = vadd.s32 %v610, 4294967272
    %v621 = vperm.slane %v572, %v620
    %vm622 = vcmask 261312
    %v623 = vsel %vm622, %v621, %v619
    %v624 = vadd.s32 %v610, 4294967264
    %v625 = vperm.slane %v575, %v624
    %vm626 = vcmask 326912
    %v627 = vsel %vm626, %v625, %v623
    %v628 = vadd.s32 %v610, 4294967256
    %v629 = vperm.slane %v578, %v628
    %vm630 = vcmask 392512
    %v631 = vsel %vm630, %v629, %v627
    %v632 = vadd.s32 %v610, 4294967248
    %v633 = vperm.slane %v581, %v632
    %vm634 = vcmask 458112
    %v635 = vsel %vm634, %v633, %v631
    %v636 = vadd.s32 %v610, 4294967240
    %v637 = vperm.slane %v584, %v636
    %vm638 = vcmask 523712
    %v639 = vsel %vm638, %v637, %v635
    %v640 = vadd.s32 %v610, 4294967232
    %v641 = vperm.slane %v587, %v640
    %vm642 = vcmask 589312
    %v643 = vsel %vm642, %v641, %v639
    %v644 = vadd.s32 %v610, 4294967224
    %v645 = vperm.slane %v590, %v644
    %vm646 = vcmask 654912
    %v647 = vsel %vm646, %v645, %v643
    %v648 = vadd.s32 %v610, 4294967216
    %v649 = vperm.slane %v593, %v648
    %vm650 = vcmask 720512
    %v651 = vsel %vm650, %v649, %v647
    %v652 = vadd.s32 %v610, 4294967208
    %v653 = vperm.slane %v596, %v652
    %vm654 = vcmask 786112
    %v655 = vsel %vm654, %v653, %v651
    %v656 = vadd.s32 %v610, 4294967200
    %v657 = vperm.slane %v599, %v656
    %vm658 = vcmask 851712
    %v659 = vsel %vm658, %v657, %v655
    %v660 = vadd.s32 %v610, 4294967192
    %v661 = vperm.slane %v602, %v660
    %vm662 = vcmask 917312
    %v663 = vsel %vm662, %v661, %v659
    %v664 = vadd.s32 %v610, 4294967184
    %v665 = vperm.slane %v605, %v664
    %vm666 = vcmask 982912
    %v667 = vsel %vm666, %v665, %v663
    %v668 = vadd.s32 %v610, 4294967176
    %v669 = vperm.slane %v608, %v668
    %vm670 = vcmask 1048512
    %v671 = vsel %vm670, %v669, %v667
    %v673 = vmul.f32 %v265, %v671
    %v674 = vperm.slane %v249, %v610
    %v675 = vperm.slane %v250, %v612
    %v676 = vsel %vm614, %v675, %v674
    %v677 = vperm.slane %v251, %v616
    %v678 = vsel %vm618, %v677, %v676
    %v679 = vperm.slane %v252, %v620
    %v680 = vsel %vm622, %v679, %v678
    %v681 = vperm.slane %v253, %v624
    %v682 = vsel %vm626, %v681, %v680
    %v683 = vperm.slane %v254, %v628
    %v684 = vsel %vm630, %v683, %v682
    %v685 = vperm.slane %v255, %v632
    %v686 = vsel %vm634, %v685, %v684
    %v687 = vperm.slane %v256, %v636
    %v688 = vsel %vm638, %v687, %v686
    %v689 = vperm.slane %v257, %v640
    %v690 = vsel %vm642, %v689, %v688
    %v691 = vperm.slane %v258, %v644
    %v692 = vsel %vm646, %v691, %v690
    %v693 = vperm.slane %v259, %v648
    %v694 = vsel %vm650, %v693, %v692
    %v695 = vperm.slane %v260, %v652
    %v696 = vsel %vm654, %v695, %v694
    %v697 = vperm.slane %v261, %v656
    %v698 = vsel %vm658, %v697, %v696
    %v699 = vperm.slane %v262, %v660
    %v700 = vsel %vm662, %v699, %v698
    %v701 = vperm.slane %v263, %v664
    %v702 = vsel %vm666, %v701, %v700
    %v703 = vperm.slane %v264, %v668
    %v704 = vsel %vm670, %v703, %v702
    %v707 = vperm.slane %v673, 0
    %vm709 = vcmask 1040384
    %v710 = vsel %vm709, %v704, %v707
    %711 = vst [vmem:[#allocation3] sm:$0x3] %v710
    // Predicated region
    $region26: #{tpu_custom_call.1} parent=1 // pred_check
      _
    $region27: #{tpu_custom_call.1} parent=1 // pred_check_branch
      %713 = sbr.rel (0) target = $region29
    $region28: #{tpu_custom_call.1} parent=1 // pred_region
      %715 = vsyncadd [#allocation4], 0
      %s717 = sshll.u32 [#allocation3], 4
      %s718 = int_to_ptr.vmem [resolvable:$true] %s717
      %s719 = sshll.u32 %s6, 4
      %s720 = int_to_ptr.hbm [resolvable:$true] %s719
      %722 = dma.vmem_to_hbm [thread:$0]  %s718, 32, %s720, [#allocation4]
    $region29: #{tpu_custom_call.1} parent=1 // pred_fallthru
      _
    // Predicated region
    $region30: #{tpu_custom_call.1} parent=1 // pred_check
      _
    $region31: #{tpu_custom_call.1} parent=1 // pred_check_branch
      %724 = sbr.rel (0) target = $region33
    $region32: #{tpu_custom_call.1} parent=1 // pred_region
      %726 = dma.done [#allocation4], 32
    $region33: #{tpu_custom_call.1} parent=1 // pred_fallthru
      _
    %727 = vsyncpa [#allocation4], 1

</llo_original>
